<compile_context>
chip_gen: v6e
topology: v6e:2x2x1
jax: 0.10.0
libtpu: 0.0.40
codegen_flags: <defaults>
</compile_context>

<pallas_src>
import math
from functools import partial

import jax
import jax.numpy as jnp
from jax.experimental import pallas as pl
from jax.experimental.pallas import tpu as pltpu


def _leaky_relu(x, slope=0.2):
    return jnp.where(x >= 0, x, slope * x)


def _sigmoid(x):
    # Mathematically identical to sigmoid; lowers to a single EUP tanh.
    return 0.5 * (jnp.tanh(0.5 * x) + 1.0)


def _vae_kernel(x_ref, i_ref, tr_ref, eps_ref,
                w1x_ref, w1i_ref, w1t_ref, b1_ref,
                w2_ref, b2_ref,
                wml_ref, bml_ref,
                wd1z_ref, wd1i_ref, wd1t_ref, bd1_ref,
                wd2_ref, bd2_ref, wd3_ref, bd3_ref,
                out_ref):
    z_dim = wd1z_ref.shape[0]
    cdt = w2_ref.dtype            # matmul compute dtype (f32 or bf16)

    i = i_ref[...]                # (Bt, 1)  f32
    tr = tr_ref[...]              # (Bt, D)  cdt

    # ----- encoder -----
    # Layer 1 consumes concat([x, I, out_tr]); weight rows are split [x | I | tr]
    # so each input is DMA'd exactly once.  The single-column I block is a VPU
    # broadcast-FMA (no MXU push).
    # TODO(synk): if feat_dim + 1 + model_dim <= 128 and the vmatmul cadence ever
    # becomes the binding slot, assemble [x | I | tr] in VMEM and use one matmul.
    h = (jnp.dot(x_ref[...], w1x_ref[...], preferred_element_type=jnp.float32)
         + jnp.dot(tr, w1t_ref[...], preferred_element_type=jnp.float32)
         + i * w1i_ref[...]
         + b1_ref[...])
    h = _leaky_relu(h)
    h = jnp.dot(h.astype(cdt), w2_ref[...],
                preferred_element_type=jnp.float32) + b2_ref[...]
    h = _leaky_relu(h)

    # Fused mean|logvar projection: one matmul into (Bt, 2*z_dim), lane-sliced.
    ml = jnp.dot(h.astype(cdt), wml_ref[...],
                 preferred_element_type=jnp.float32) + bml_ref[...]
    mean = ml[:, :z_dim]
    logvar = ml[:, z_dim:]

    # ----- reparameterization -----
    # Module passes logvar directly as "var": z = mean + logvar * eps.
    z = mean + logvar * eps_ref[...]

    # ----- decoder -----
    # Layer 1 consumes concat([z, I, out_tr]); the I (K=1) block is a VPU
    # broadcast-FMA, the z block is a broadcast-FMA only while z_dim is tiny.
    d = (jnp.dot(tr, wd1t_ref[...], preferred_element_type=jnp.float32)
         + i * wd1i_ref[...]
         + bd1_ref[...])
    if z_dim >= 8:
        d = d + jnp.dot(z, wd1z_ref[...], preferred_element_type=jnp.float32)
    else:
        for j in range(z_dim):
            d = d + z[:, j:j + 1] * wd1z_ref[j:j + 1, :]
    d = _leaky_relu(d)
    d = jnp.dot(d.astype(cdt), wd2_ref[...],
                preferred_element_type=jnp.float32) + bd2_ref[...]
    d = _leaky_relu(d)
    logits = jnp.dot(d.astype(cdt), wd3_ref[...],
                     preferred_element_type=jnp.float32) + bd3_ref[...]
    x_hat = _sigmoid(logits)

    # Single lane-dense store: [x_hat | mean | logvar | 0-pad] fills the full
    # 128-multiple output width, so the writeback is one unmasked vst stream.
    bt = x_hat.shape[0]
    pad = out_ref.shape[1] - (x_hat.shape[1] + ml.shape[1])
    pieces = [x_hat, ml]
    if pad:
        pieces.append(jnp.zeros((bt, pad), jnp.float32))
    out_ref[...] = jnp.concatenate(pieces, axis=-1)


def _linear_init(key, fan_in, fan_out):
    """PyTorch nn.Linear default init: U(-1/sqrt(fan_in), 1/sqrt(fan_in))."""
    kw, kb = jax.random.split(key)
    bound = 1.0 / jnp.sqrt(jnp.float32(fan_in))
    w = jax.random.uniform(kw, (fan_in, fan_out), jnp.float32, -bound, bound)
    b = jax.random.uniform(kb, (1, fan_out), jnp.float32, -bound, bound)
    return w, b


def init_vae_params(key, feat_dim, model_dim, output_dim,
                    hidden_dim=32, latent_dim=64, z_dim=2):
    enc_in = feat_dim + 1 + model_dim          # what forward() actually produces
    dec_in = z_dim + 1 + model_dim

    keys = jax.random.split(key, 7)
    w1, b1 = _linear_init(keys[0], enc_in, hidden_dim)
    w2, b2 = _linear_init(keys[1], hidden_dim, latent_dim)
    wm, bm = _linear_init(keys[2], latent_dim, z_dim)
    wl, bl = _linear_init(keys[3], latent_dim, z_dim)
    wd1, bd1 = _linear_init(keys[4], dec_in, latent_dim)
    wd2, bd2 = _linear_init(keys[5], latent_dim, hidden_dim)
    wd3, bd3 = _linear_init(keys[6], hidden_dim, output_dim)

    return dict(
        # encoder layer-1 weight rows split as [x | I | out_tr]
        w1x=w1[:feat_dim], w1i=w1[feat_dim:feat_dim + 1], w1t=w1[feat_dim + 1:], b1=b1,
        w2=w2, b2=b2,
        # fused mean|logvar projection
        wml=jnp.concatenate([wm, wl], axis=1),
        bml=jnp.concatenate([bm, bl], axis=1),
        # decoder layer-1 weight rows split as [z | I | out_tr]
        wd1z=wd1[:z_dim], wd1i=wd1[z_dim:z_dim + 1], wd1t=wd1[z_dim + 1:], bd1=bd1,
        wd2=wd2, bd2=bd2, wd3=wd3, bd3=bd3)


# Primary tuning knob: rows per grid step.  With <=64-lane features a 4096-row
# tile (double-buffered, plus the 128-lane padded output tile) stays well under
# the 16 MiB v5e scoped-VMEM default and v7x's 64 MiB physical VMEM.
_MAX_BATCH_TILE = 4096
# Below this batch size, use a single grid step (block == full batch).
_MIN_SPLIT_BATCH = 16

_WEIGHT_ORDER = ("w1x", "w1i", "w1t", "b1", "w2", "b2", "wml", "bml",
                 "wd1z", "wd1i", "wd1t", "bd1", "wd2", "bd2", "wd3", "bd3")

# Weights that feed MXU matmuls (castable to bf16); the rest stay f32 because
# they only participate in f32 VPU math (broadcast FMAs, biases).
_MATMUL_WEIGHTS = frozenset({"w1x", "w1t", "w2", "wml", "wd1t", "wd2", "wd3"})


def _round_up(a, m):
    return (a + m - 1) // m * m


def _nbytes(shape, dtype):
    return math.prod(shape) * jnp.dtype(dtype).itemsize


@partial(jax.jit, static_argnames=("matmul_dtype",))
def vae_forward(params, x, I, out_tr, eps, matmul_dtype=jnp.float32):
    """Pallas implementation of VAE.forward.

    x: (B, F), I: (B, 1), out_tr: (B, D), eps: (B, z_dim) — the randn_like draw.
    Returns (x_hat, mean, logvar) as float32.

    matmul_dtype=jnp.bfloat16 halves HBM traffic for x / out_tr / matmul weights
    and uses the native bf16 MXU on v6e/v7x (accumulation stays f32).
    """
    B, feat_dim = x.shape
    model_dim = out_tr.shape[1]
    z_dim = eps.shape[1]
    output_dim = params["wd3"].shape[1]

    x = x.astype(matmul_dtype)
    out_tr = out_tr.astype(matmul_dtype)
    I = I.astype(jnp.float32)
    eps = eps.astype(jnp.float32)
    weights = tuple(
        params[k].astype(matmul_dtype if k in _MATMUL_WEIGHTS else jnp.float32)
        for k in _WEIGHT_ORDER)

    # ----- batch tiling (pad B up to a multiple of the tile if needed) -----
    if B < _MIN_SPLIT_BATCH:
        block_b, Bp = B, B                       # one grid step; block == full dim
    else:
        # >= 2 grid steps so ("parallel",) can shard tiles across both v7x TCs.
        block_b = min(_MAX_BATCH_TILE, _round_up(pl.cdiv(B, 2), 8))
        Bp = _round_up(B, block_b)
    if Bp != B:
        pad = Bp - B
        padf = lambda a: jnp.pad(a, ((0, pad), (0, 0)))
        x, I, out_tr, eps = padf(x), padf(I), padf(out_tr), padf(eps)

    grid = (Bp // block_b,)

    def batch_spec(width):
        return pl.BlockSpec((block_b, width), lambda b: (b, 0))

    def resident_spec(arr):
        # Full-array block, same block index every grid step -> stays VMEM-resident.
        return pl.BlockSpec(arr.shape, lambda b: (0, 0))

    in_specs = ([batch_spec(feat_dim), batch_spec(1),
                 batch_spec(model_dim), batch_spec(z_dim)]
                + [resident_spec(w) for w in weights])

    # Lane-dense packed output: [x_hat | mean | logvar] padded to a 128 multiple.
    packed_width = output_dim + 2 * z_dim
    out_width = _round_up(packed_width, 128)
    out_spec = pl.BlockSpec((block_b, out_width), lambda b: (b, 0))
    out_shape = jax.ShapeDtypeStruct((Bp, out_width), jnp.float32)

    # Explicit scoped-VMEM budget from the actual per-tile footprint
    # (double-buffered batch/output tiles + resident weights) plus slack.
    tile_in = (_nbytes((block_b, feat_dim), matmul_dtype)
               + _nbytes((block_b, 1), jnp.float32)
               + _nbytes((block_b, model_dim), matmul_dtype)
               + _nbytes((block_b, z_dim), jnp.float32))
    tile_out = _nbytes((block_b, out_width), jnp.float32)
    weight_bytes = sum(_nbytes(w.shape, w.dtype) for w in weights)
    footprint = 2 * (tile_in + tile_out + weight_bytes)
    vmem_limit = int(min(64 << 20, footprint + (16 << 20)))

    packed = pl.pallas_call(
        _vae_kernel,
        grid=grid,
        in_specs=in_specs,
        out_specs=out_spec,
        out_shape=out_shape,
        compiler_params=pltpu.CompilerParams(
            dimension_semantics=("parallel",),
            vmem_limit_bytes=vmem_limit),
    )(x, I, out_tr, eps, *weights)

    packed = packed[:B]
    x_hat = packed[:, :output_dim]
    mean = packed[:, output_dim:output_dim + z_dim]
    logvar = packed[:, output_dim + z_dim:packed_width]
    return x_hat, mean, logvar


def _reference_forward(params, x, I, out_tr, eps):
    """Plain-JAX reference (unsplit weights) for the correctness check."""
    leaky = lambda v: jnp.where(v >= 0, v, 0.2 * v)
    z_dim = params["wd1z"].shape[0]
    w1 = jnp.concatenate([params["w1x"], params["w1i"], params["w1t"]], axis=0)
    wd1 = jnp.concatenate([params["wd1z"], params["wd1i"], params["wd1t"]], axis=0)
    wm, wl = params["wml"][:, :z_dim], params["wml"][:, z_dim:]
    bm, bl = params["bml"][:, :z_dim], params["bml"][:, z_dim:]

    conca = jnp.concatenate([x, I, out_tr], axis=1)
    h = leaky(conca @ w1 + params["b1"])
    h = leaky(h @ params["w2"] + params["b2"])
    mean = h @ wm + bm
    logvar = h @ wl + bl
    z = mean + logvar * eps
    conca_dec = jnp.concatenate([z, I, out_tr], axis=1)
    d = leaky(conca_dec @ wd1 + params["bd1"])
    d = leaky(d @ params["wd2"] + params["bd2"])
    x_hat = jax.nn.sigmoid(d @ params["wd3"] + params["bd3"])
    return x_hat, mean, logvar


if __name__ == "__main__":
    feat_dim, model_dim, output_dim = 4, 8, 4
    hidden_dim, latent_dim, z_dim = 32, 64, 2

    root = jax.random.PRNGKey(0)
    k_params = jax.random.fold_in(root, 1)
    params = init_vae_params(k_params, feat_dim, model_dim, output_dim,
                             hidden_dim=hidden_dim, latent_dim=latent_dim,
                             z_dim=z_dim)

    def make_inputs(B):
        kx, ki, kt, ke = jax.random.split(jax.random.fold_in(root, B), 4)
        x = jax.random.normal(kx, (B, feat_dim), jnp.float32)
        I = (jax.random.uniform(ki, (B, 1)) > 0.5).astype(jnp.float32)
        out_tr = jax.random.normal(kt, (B, model_dim), jnp.float32)
        eps = jax.random.normal(ke, (B, z_dim), jnp.float32)   # randn_like(logvar)
        return x, I, out_tr, eps

    # 1) tiny batch, f32, single grid step — tight correctness check
    inputs = make_inputs(2)
    got = vae_forward(params, *inputs)
    jax.block_until_ready(got)
    ref = _reference_forward(params, *inputs)
    assert got[0].shape == (2, output_dim)
    assert got[1].shape == (2, z_dim) and got[2].shape == (2, z_dim)
    for g, w in zip(got, ref):
        assert jnp.allclose(g, w, atol=1e-4, rtol=1e-4), (g, w)

    # 2) larger batch, f32 — exercises >=2 grid steps + batch padding path
    inputs = make_inputs(50)
    got = vae_forward(params, *inputs)
    jax.block_until_ready(got)
    ref = _reference_forward(params, *inputs)
    for g, w in zip(got, ref):
        assert jnp.allclose(g, w, atol=1e-4, rtol=1e-4), (g, w)

    # 3) bf16 matmul path (HBM/MXU saver on v6e/v7x) — loose sanity check
    got = vae_forward(params, *inputs, matmul_dtype=jnp.bfloat16)
    jax.block_until_ready(got)
    for g, w in zip(got, ref):
        assert jnp.allclose(g, w, atol=1e-1, rtol=1e-1), (g, w)

    print("KERNEL_OK")
</pallas_src>

<mosaic_0001>
module attributes {stable_mosaic.version = 11 : i64} {
  func.func @_vae_kernel(%arg0: i32, %arg1: memref<2x4xf32, #tpu.memory_space<vmem>>, %arg2: memref<2x1xf32, #tpu.memory_space<vmem>>, %arg3: memref<2x8xf32, #tpu.memory_space<vmem>>, %arg4: memref<2x2xf32, #tpu.memory_space<vmem>>, %arg5: memref<4x32xf32, #tpu.memory_space<vmem>>, %arg6: memref<1x32xf32, #tpu.memory_space<vmem>>, %arg7: memref<8x32xf32, #tpu.memory_space<vmem>>, %arg8: memref<1x32xf32, #tpu.memory_space<vmem>>, %arg9: memref<32x64xf32, #tpu.memory_space<vmem>>, %arg10: memref<1x64xf32, #tpu.memory_space<vmem>>, %arg11: memref<64x4xf32, #tpu.memory_space<vmem>>, %arg12: memref<1x4xf32, #tpu.memory_space<vmem>>, %arg13: memref<2x64xf32, #tpu.memory_space<vmem>>, %arg14: memref<1x64xf32, #tpu.memory_space<vmem>>, %arg15: memref<8x64xf32, #tpu.memory_space<vmem>>, %arg16: memref<1x64xf32, #tpu.memory_space<vmem>>, %arg17: memref<64x32xf32, #tpu.memory_space<vmem>>, %arg18: memref<1x32xf32, #tpu.memory_space<vmem>>, %arg19: memref<32x4xf32, #tpu.memory_space<vmem>>, %arg20: memref<1x4xf32, #tpu.memory_space<vmem>>, %arg21: memref<2x128xf32, #tpu.memory_space<vmem>>) attributes {dimension_semantics = [#tpu.dimension_semantics<parallel>], iteration_bounds = array<i64: 1>, scalar_prefetch = 0 : i64, scratch_operands = 0 : i64, tpu.core_type = #tpu.core_type<tc>, window_params = [{transform_indices = @transform_0, window_bounds = array<i64: 2, 4>}, {transform_indices = @transform_1, window_bounds = array<i64: 2, 1>}, {transform_indices = @transform_2, window_bounds = array<i64: 2, 8>}, {transform_indices = @transform_3, window_bounds = array<i64: 2, 2>}, {pipeline_mode = #tpu.pipeline_mode<synchronous>, transform_indices = @transform_4, window_bounds = array<i64: 4, 32>}, {pipeline_mode = #tpu.pipeline_mode<synchronous>, transform_indices = @transform_5, window_bounds = array<i64: 1, 32>}, {pipeline_mode = #tpu.pipeline_mode<synchronous>, transform_indices = @transform_6, window_bounds = array<i64: 8, 32>}, {pipeline_mode = #tpu.pipeline_mode<synchronous>, transform_indices = @transform_7, window_bounds = array<i64: 1, 32>}, {pipeline_mode = #tpu.pipeline_mode<synchronous>, transform_indices = @transform_8, window_bounds = array<i64: 32, 64>}, {pipeline_mode = #tpu.pipeline_mode<synchronous>, transform_indices = @transform_9, window_bounds = array<i64: 1, 64>}, {pipeline_mode = #tpu.pipeline_mode<synchronous>, transform_indices = @transform_10, window_bounds = array<i64: 64, 4>}, {pipeline_mode = #tpu.pipeline_mode<synchronous>, transform_indices = @transform_11, window_bounds = array<i64: 1, 4>}, {pipeline_mode = #tpu.pipeline_mode<synchronous>, transform_indices = @transform_12, window_bounds = array<i64: 2, 64>}, {pipeline_mode = #tpu.pipeline_mode<synchronous>, transform_indices = @transform_13, window_bounds = array<i64: 1, 64>}, {pipeline_mode = #tpu.pipeline_mode<synchronous>, transform_indices = @transform_14, window_bounds = array<i64: 8, 64>}, {pipeline_mode = #tpu.pipeline_mode<synchronous>, transform_indices = @transform_15, window_bounds = array<i64: 1, 64>}, {pipeline_mode = #tpu.pipeline_mode<synchronous>, transform_indices = @transform_16, window_bounds = array<i64: 64, 32>}, {pipeline_mode = #tpu.pipeline_mode<synchronous>, transform_indices = @transform_17, window_bounds = array<i64: 1, 32>}, {pipeline_mode = #tpu.pipeline_mode<synchronous>, transform_indices = @transform_18, window_bounds = array<i64: 32, 4>}, {pipeline_mode = #tpu.pipeline_mode<synchronous>, transform_indices = @transform_19, window_bounds = array<i64: 1, 4>}, {transform_indices = @transform_20, window_bounds = array<i64: 2, 128>}]} {
    %c0 = arith.constant 0 : index
    %c0_0 = arith.constant 0 : index
    %0 = vector.load %arg2[%c0, %c0_0] : memref<2x1xf32, #tpu.memory_space<vmem>>, vector<2x1xf32>
    %c0_1 = arith.constant 0 : index
    %c0_2 = arith.constant 0 : index
    %1 = vector.load %arg3[%c0_1, %c0_2] : memref<2x8xf32, #tpu.memory_space<vmem>>, vector<2x8xf32>
    %c0_3 = arith.constant 0 : index
    %c0_4 = arith.constant 0 : index
    %2 = vector.load %arg1[%c0_3, %c0_4] : memref<2x4xf32, #tpu.memory_space<vmem>>, vector<2x4xf32>
    %c0_5 = arith.constant 0 : index
    %c0_6 = arith.constant 0 : index
    %3 = vector.load %arg5[%c0_5, %c0_6] : memref<4x32xf32, #tpu.memory_space<vmem>>, vector<4x32xf32>
    %cst = arith.constant dense<0.000000e+00> : vector<2x32xf32>
    %4 = tpu.matmul %2, %3, %cst {dimension_numbers = #tpu.dot_dimension_numbers<[1], [0], [0], [1], [0, 0, 1, 1], [], []>} : vector<2x4xf32>, vector<4x32xf32>, vector<2x32xf32> -> vector<2x32xf32>
    %c0_7 = arith.constant 0 : index
    %c0_8 = arith.constant 0 : index
    %5 = vector.load %arg7[%c0_7, %c0_8] : memref<8x32xf32, #tpu.memory_space<vmem>>, vector<8x32xf32>
    %cst_9 = arith.constant dense<0.000000e+00> : vector<2x32xf32>
    %6 = tpu.matmul %1, %5, %cst_9 {dimension_numbers = #tpu.dot_dimension_numbers<[1], [0], [0], [1], [0, 0, 1, 1], [], []>} : vector<2x8xf32>, vector<8x32xf32>, vector<2x32xf32> -> vector<2x32xf32>
    %7 = arith.addf %4, %6 : vector<2x32xf32>
    %c0_10 = arith.constant 0 : index
    %c0_11 = arith.constant 0 : index
    %8 = vector.load %arg6[%c0_10, %c0_11] : memref<1x32xf32, #tpu.memory_space<vmem>>, vector<1x32xf32>
    %9 = vector.broadcast %0 : vector<2x1xf32> to vector<2x32xf32>
    %10 = vector.broadcast %8 : vector<1x32xf32> to vector<2x32xf32>
    %11 = arith.mulf %9, %10 : vector<2x32xf32>
    %12 = arith.addf %7, %11 : vector<2x32xf32>
    %c0_12 = arith.constant 0 : index
    %c0_13 = arith.constant 0 : index
    %13 = vector.load %arg8[%c0_12, %c0_13] : memref<1x32xf32, #tpu.memory_space<vmem>>, vector<1x32xf32>
    %14 = vector.broadcast %13 : vector<1x32xf32> to vector<2x32xf32>
    %15 = arith.addf %12, %14 : vector<2x32xf32>
    %cst_14 = arith.constant 0.000000e+00 : f32
    %16 = vector.broadcast %cst_14 : f32 to vector<2x32xf32>
    %17 = arith.cmpf oge, %15, %16 : vector<2x32xf32>
    %cst_15 = arith.constant 2.000000e-01 : f32
    %18 = vector.broadcast %cst_15 : f32 to vector<2x32xf32>
    %19 = arith.mulf %18, %15 : vector<2x32xf32>
    %20 = arith.select %17, %15, %19 : vector<2x32xi1>, vector<2x32xf32>
    %c0_16 = arith.constant 0 : index
    %c0_17 = arith.constant 0 : index
    %21 = vector.load %arg9[%c0_16, %c0_17] : memref<32x64xf32, #tpu.memory_space<vmem>>, vector<32x64xf32>
    %cst_18 = arith.constant dense<0.000000e+00> : vector<2x64xf32>
    %22 = tpu.matmul %20, %21, %cst_18 {dimension_numbers = #tpu.dot_dimension_numbers<[1], [0], [0], [1], [0, 0, 1, 1], [], []>} : vector<2x32xf32>, vector<32x64xf32>, vector<2x64xf32> -> vector<2x64xf32>
    %c0_19 = arith.constant 0 : index
    %c0_20 = arith.constant 0 : index
    %23 = vector.load %arg10[%c0_19, %c0_20] : memref<1x64xf32, #tpu.memory_space<vmem>>, vector<1x64xf32>
    %24 = vector.broadcast %23 : vector<1x64xf32> to vector<2x64xf32>
    %25 = arith.addf %22, %24 : vector<2x64xf32>
    %cst_21 = arith.constant 0.000000e+00 : f32
    %26 = vector.broadcast %cst_21 : f32 to vector<2x64xf32>
    %27 = arith.cmpf oge, %25, %26 : vector<2x64xf32>
    %cst_22 = arith.constant 2.000000e-01 : f32
    %28 = vector.broadcast %cst_22 : f32 to vector<2x64xf32>
    %29 = arith.mulf %28, %25 : vector<2x64xf32>
    %30 = arith.select %27, %25, %29 : vector<2x64xi1>, vector<2x64xf32>
    %c0_23 = arith.constant 0 : index
    %c0_24 = arith.constant 0 : index
    %31 = vector.load %arg11[%c0_23, %c0_24] : memref<64x4xf32, #tpu.memory_space<vmem>>, vector<64x4xf32>
    %cst_25 = arith.constant dense<0.000000e+00> : vector<2x4xf32>
    %32 = tpu.matmul %30, %31, %cst_25 {dimension_numbers = #tpu.dot_dimension_numbers<[1], [0], [0], [1], [0, 0, 1, 1], [], []>} : vector<2x64xf32>, vector<64x4xf32>, vector<2x4xf32> -> vector<2x4xf32>
    %c0_26 = arith.constant 0 : index
    %c0_27 = arith.constant 0 : index
    %33 = vector.load %arg12[%c0_26, %c0_27] : memref<1x4xf32, #tpu.memory_space<vmem>>, vector<1x4xf32>
    %34 = vector.broadcast %33 : vector<1x4xf32> to vector<2x4xf32>
    %35 = arith.addf %32, %34 : vector<2x4xf32>
    %36 = vector.extract_strided_slice %35 {offsets = [0, 0], sizes = [2, 2], strides = [1, 1]} : vector<2x4xf32> to vector<2x2xf32>
    %37 = vector.extract_strided_slice %35 {offsets = [0, 2], sizes = [2, 2], strides = [1, 1]} : vector<2x4xf32> to vector<2x2xf32>
    %c0_28 = arith.constant 0 : index
    %c0_29 = arith.constant 0 : index
    %38 = vector.load %arg4[%c0_28, %c0_29] : memref<2x2xf32, #tpu.memory_space<vmem>>, vector<2x2xf32>
    %39 = arith.mulf %37, %38 : vector<2x2xf32>
    %40 = arith.addf %36, %39 : vector<2x2xf32>
    %c0_30 = arith.constant 0 : index
    %c0_31 = arith.constant 0 : index
    %41 = vector.load %arg15[%c0_30, %c0_31] : memref<8x64xf32, #tpu.memory_space<vmem>>, vector<8x64xf32>
    %cst_32 = arith.constant dense<0.000000e+00> : vector<2x64xf32>
    %42 = tpu.matmul %1, %41, %cst_32 {dimension_numbers = #tpu.dot_dimension_numbers<[1], [0], [0], [1], [0, 0, 1, 1], [], []>} : vector<2x8xf32>, vector<8x64xf32>, vector<2x64xf32> -> vector<2x64xf32>
    %c0_33 = arith.constant 0 : index
    %c0_34 = arith.constant 0 : index
    %43 = vector.load %arg14[%c0_33, %c0_34] : memref<1x64xf32, #tpu.memory_space<vmem>>, vector<1x64xf32>
    %44 = vector.broadcast %0 : vector<2x1xf32> to vector<2x64xf32>
    %45 = vector.broadcast %43 : vector<1x64xf32> to vector<2x64xf32>
    %46 = arith.mulf %44, %45 : vector<2x64xf32>
    %47 = arith.addf %42, %46 : vector<2x64xf32>
    %c0_35 = arith.constant 0 : index
    %c0_36 = arith.constant 0 : index
    %48 = vector.load %arg16[%c0_35, %c0_36] : memref<1x64xf32, #tpu.memory_space<vmem>>, vector<1x64xf32>
    %49 = vector.broadcast %48 : vector<1x64xf32> to vector<2x64xf32>
    %50 = arith.addf %47, %49 : vector<2x64xf32>
    %51 = vector.extract_strided_slice %40 {offsets = [0, 0], sizes = [2, 1], strides = [1, 1]} : vector<2x2xf32> to vector<2x1xf32>
    %c0_37 = arith.constant 0 : index
    %c0_38 = arith.constant 0 : index
    %52 = vector.load %arg13[%c0_37, %c0_38] : memref<2x64xf32, #tpu.memory_space<vmem>>, vector<1x64xf32>
    %53 = vector.broadcast %51 : vector<2x1xf32> to vector<2x64xf32>
    %54 = vector.broadcast %52 : vector<1x64xf32> to vector<2x64xf32>
    %55 = arith.mulf %53, %54 : vector<2x64xf32>
    %56 = arith.addf %50, %55 : vector<2x64xf32>
    %57 = vector.extract_strided_slice %40 {offsets = [0, 1], sizes = [2, 1], strides = [1, 1]} : vector<2x2xf32> to vector<2x1xf32>
    %c1 = arith.constant 1 : index
    %c0_39 = arith.constant 0 : index
    %58 = vector.load %arg13[%c1, %c0_39] : memref<2x64xf32, #tpu.memory_space<vmem>>, vector<1x64xf32>
    %59 = vector.broadcast %57 : vector<2x1xf32> to vector<2x64xf32>
    %60 = vector.broadcast %58 : vector<1x64xf32> to vector<2x64xf32>
    %61 = arith.mulf %59, %60 : vector<2x64xf32>
    %62 = arith.addf %56, %61 : vector<2x64xf32>
    %cst_40 = arith.constant 0.000000e+00 : f32
    %63 = vector.broadcast %cst_40 : f32 to vector<2x64xf32>
    %64 = arith.cmpf oge, %62, %63 : vector<2x64xf32>
    %cst_41 = arith.constant 2.000000e-01 : f32
    %65 = vector.broadcast %cst_41 : f32 to vector<2x64xf32>
    %66 = arith.mulf %65, %62 : vector<2x64xf32>
    %67 = arith.select %64, %62, %66 : vector<2x64xi1>, vector<2x64xf32>
    %c0_42 = arith.constant 0 : index
    %c0_43 = arith.constant 0 : index
    %68 = vector.load %arg17[%c0_42, %c0_43] : memref<64x32xf32, #tpu.memory_space<vmem>>, vector<64x32xf32>
    %cst_44 = arith.constant dense<0.000000e+00> : vector<2x32xf32>
    %69 = tpu.matmul %67, %68, %cst_44 {dimension_numbers = #tpu.dot_dimension_numbers<[1], [0], [0], [1], [0, 0, 1, 1], [], []>} : vector<2x64xf32>, vector<64x32xf32>, vector<2x32xf32> -> vector<2x32xf32>
    %c0_45 = arith.constant 0 : index
    %c0_46 = arith.constant 0 : index
    %70 = vector.load %arg18[%c0_45, %c0_46] : memref<1x32xf32, #tpu.memory_space<vmem>>, vector<1x32xf32>
    %71 = vector.broadcast %70 : vector<1x32xf32> to vector<2x32xf32>
    %72 = arith.addf %69, %71 : vector<2x32xf32>
    %cst_47 = arith.constant 0.000000e+00 : f32
    %73 = vector.broadcast %cst_47 : f32 to vector<2x32xf32>
    %74 = arith.cmpf oge, %72, %73 : vector<2x32xf32>
    %cst_48 = arith.constant 2.000000e-01 : f32
    %75 = vector.broadcast %cst_48 : f32 to vector<2x32xf32>
    %76 = arith.mulf %75, %72 : vector<2x32xf32>
    %77 = arith.select %74, %72, %76 : vector<2x32xi1>, vector<2x32xf32>
    %c0_49 = arith.constant 0 : index
    %c0_50 = arith.constant 0 : index
    %78 = vector.load %arg19[%c0_49, %c0_50] : memref<32x4xf32, #tpu.memory_space<vmem>>, vector<32x4xf32>
    %cst_51 = arith.constant dense<0.000000e+00> : vector<2x4xf32>
    %79 = tpu.matmul %77, %78, %cst_51 {dimension_numbers = #tpu.dot_dimension_numbers<[1], [0], [0], [1], [0, 0, 1, 1], [], []>} : vector<2x32xf32>, vector<32x4xf32>, vector<2x4xf32> -> vector<2x4xf32>
    %c0_52 = arith.constant 0 : index
    %c0_53 = arith.constant 0 : index
    %80 = vector.load %arg20[%c0_52, %c0_53] : memref<1x4xf32, #tpu.memory_space<vmem>>, vector<1x4xf32>
    %81 = vector.broadcast %80 : vector<1x4xf32> to vector<2x4xf32>
    %82 = arith.addf %79, %81 : vector<2x4xf32>
    %cst_54 = arith.constant 5.000000e-01 : f32
    %83 = vector.broadcast %cst_54 : f32 to vector<2x4xf32>
    %84 = arith.mulf %83, %82 : vector<2x4xf32>
    %85 = math.tanh %84 : vector<2x4xf32>
    %cst_55 = arith.constant 1.000000e+00 : f32
    %86 = vector.broadcast %cst_55 : f32 to vector<2x4xf32>
    %87 = arith.addf %85, %86 : vector<2x4xf32>
    %cst_56 = arith.constant 5.000000e-01 : f32
    %88 = vector.broadcast %cst_56 : f32 to vector<2x4xf32>
    %89 = arith.mulf %88, %87 : vector<2x4xf32>
    %cst_57 = arith.constant 0.000000e+00 : f32
    %90 = vector.broadcast %cst_57 : f32 to vector<2x120xf32>
    %91 = tpu.concatenate %89, %35, %90 in 1 : vector<2x4xf32>, vector<2x4xf32>, vector<2x120xf32> -> vector<2x128xf32>
    %c0_58 = arith.constant 0 : index
    %c0_59 = arith.constant 0 : index
    %92 = vector.load %arg21[%c0_58, %c0_59] : memref<2x128xf32, #tpu.memory_space<vmem>>, vector<2x128xf32>
    tpu.vector_store %arg21[%c0_58, %c0_59], %91 {strides = array<i32>} : memref<2x128xf32, #tpu.memory_space<vmem>>, vector<2x128xf32>,
    return
  }
  func.func @transform_0(%arg0: i32) -> (i32, i32) {
    %c0_i32 = arith.constant 0 : i32
    %c0_i32_0 = arith.constant 0 : i32
    return %arg0, %c0_i32 : i32, i32
  }
  func.func @transform_1(%arg0: i32) -> (i32, i32) {
    %c0_i32 = arith.constant 0 : i32
    %c0_i32_0 = arith.constant 0 : i32
    return %arg0, %c0_i32 : i32, i32
  }
  func.func @transform_2(%arg0: i32) -> (i32, i32) {
    %c0_i32 = arith.constant 0 : i32
    %c0_i32_0 = arith.constant 0 : i32
    return %arg0, %c0_i32 : i32, i32
  }
  func.func @transform_3(%arg0: i32) -> (i32, i32) {
    %c0_i32 = arith.constant 0 : i32
    %c0_i32_0 = arith.constant 0 : i32
    return %arg0, %c0_i32 : i32, i32
  }
  func.func @transform_4(%arg0: i32) -> (i32, i32) {
    %c0_i32 = arith.constant 0 : i32
    %c0_i32_0 = arith.constant 0 : i32
    %c0_i32_1 = arith.constant 0 : i32
    return %c0_i32, %c0_i32_0 : i32, i32
  }
  func.func @transform_5(%arg0: i32) -> (i32, i32) {
    %c0_i32 = arith.constant 0 : i32
    %c0_i32_0 = arith.constant 0 : i32
    %c0_i32_1 = arith.constant 0 : i32
    return %c0_i32, %c0_i32_0 : i32, i32
  }
  func.func @transform_6(%arg0: i32) -> (i32, i32) {
    %c0_i32 = arith.constant 0 : i32
    %c0_i32_0 = arith.constant 0 : i32
    %c0_i32_1 = arith.constant 0 : i32
    return %c0_i32, %c0_i32_0 : i32, i32
  }
  func.func @transform_7(%arg0: i32) -> (i32, i32) {
    %c0_i32 = arith.constant 0 : i32
    %c0_i32_0 = arith.constant 0 : i32
    %c0_i32_1 = arith.constant 0 : i32
    return %c0_i32, %c0_i32_0 : i32, i32
  }
  func.func @transform_8(%arg0: i32) -> (i32, i32) {
    %c0_i32 = arith.constant 0 : i32
    %c0_i32_0 = arith.constant 0 : i32
    %c0_i32_1 = arith.constant 0 : i32
    return %c0_i32, %c0_i32_0 : i32, i32
  }
  func.func @transform_9(%arg0: i32) -> (i32, i32) {
    %c0_i32 = arith.constant 0 : i32
    %c0_i32_0 = arith.constant 0 : i32
    %c0_i32_1 = arith.constant 0 : i32
    return %c0_i32, %c0_i32_0 : i32, i32
  }
  func.func @transform_10(%arg0: i32) -> (i32, i32) {
    %c0_i32 = arith.constant 0 : i32
    %c0_i32_0 = arith.constant 0 : i32
    %c0_i32_1 = arith.constant 0 : i32
    return %c0_i32, %c0_i32_0 : i32, i32
  }
  func.func @transform_11(%arg0: i32) -> (i32, i32) {
    %c0_i32 = arith.constant 0 : i32
    %c0_i32_0 = arith.constant 0 : i32
    %c0_i32_1 = arith.constant 0 : i32
    return %c0_i32, %c0_i32_0 : i32, i32
  }
  func.func @transform_12(%arg0: i32) -> (i32, i32) {
    %c0_i32 = arith.constant 0 : i32
    %c0_i32_0 = arith.constant 0 : i32
    %c0_i32_1 = arith.constant 0 : i32
    return %c0_i32, %c0_i32_0 : i32, i32
  }
  func.func @transform_13(%arg0: i32) -> (i32, i32) {
    %c0_i32 = arith.constant 0 : i32
    %c0_i32_0 = arith.constant 0 : i32
    %c0_i32_1 = arith.constant 0 : i32
    return %c0_i32, %c0_i32_0 : i32, i32
  }
  func.func @transform_14(%arg0: i32) -> (i32, i32) {
    %c0_i32 = arith.constant 0 : i32
    %c0_i32_0 = arith.constant 0 : i32
    %c0_i32_1 = arith.constant 0 : i32
    return %c0_i32, %c0_i32_0 : i32, i32
  }
  func.func @transform_15(%arg0: i32) -> (i32, i32) {
    %c0_i32 = arith.constant 0 : i32
    %c0_i32_0 = arith.constant 0 : i32
    %c0_i32_1 = arith.constant 0 : i32
    return %c0_i32, %c0_i32_0 : i32, i32
  }
  func.func @transform_16(%arg0: i32) -> (i32, i32) {
    %c0_i32 = arith.constant 0 : i32
    %c0_i32_0 = arith.constant 0 : i32
    %c0_i32_1 = arith.constant 0 : i32
    return %c0_i32, %c0_i32_0 : i32, i32
  }
  func.func @transform_17(%arg0: i32) -> (i32, i32) {
    %c0_i32 = arith.constant 0 : i32
    %c0_i32_0 = arith.constant 0 : i32
    %c0_i32_1 = arith.constant 0 : i32
    return %c0_i32, %c0_i32_0 : i32, i32
  }
  func.func @transform_18(%arg0: i32) -> (i32, i32) {
    %c0_i32 = arith.constant 0 : i32
    %c0_i32_0 = arith.constant 0 : i32
    %c0_i32_1 = arith.constant 0 : i32
    return %c0_i32, %c0_i32_0 : i32, i32
  }
  func.func @transform_19(%arg0: i32) -> (i32, i32) {
    %c0_i32 = arith.constant 0 : i32
    %c0_i32_0 = arith.constant 0 : i32
    %c0_i32_1 = arith.constant 0 : i32
    return %c0_i32, %c0_i32_0 : i32, i32
  }
  func.func @transform_20(%arg0: i32) -> (i32, i32) {
    %c0_i32 = arith.constant 0 : i32
    %c0_i32_0 = arith.constant 0 : i32
    return %arg0, %c0_i32 : i32, i32
  }
}

</mosaic_0001>

<llo_original>
// kernel: vae_forward.1
$region0: #{vae_forward.1}
  #allocation0 [shape = 'u32[]', space=smem, size = 0x4, offset = 0x4, fixed_abs, tag = 'smem constant byte address 0x4 - core index']
  #allocation1 [shape = 'u32[144,128]{1,0:T(1,128)}', space=vmem, size = 0x12000, scoped, tag = 'internal scratch']
  %s0 = inlined_call_operand.vmem [shape: f32[2,4], index: 0, kind: input, shape index: {}]
  %s1 = inlined_call_operand.vmem [shape: f32[2,1], index: 1, kind: input, shape index: {}]
  %s2 = inlined_call_operand.vmem [shape: f32[2,8], index: 2, kind: input, shape index: {}]
  %s3 = inlined_call_operand.vmem [shape: f32[2,2], index: 3, kind: input, shape index: {}]
  %s4 = inlined_call_operand.vmem [shape: f32[4,32], index: 4, kind: input, shape index: {}]
  %s5 = inlined_call_operand.vmem [shape: f32[1,32], index: 5, kind: input, shape index: {}]
  %s6 = inlined_call_operand.vmem [shape: f32[8,32], index: 6, kind: input, shape index: {}]
  %s7 = inlined_call_operand.vmem [shape: f32[1,32], index: 7, kind: input, shape index: {}]
  %s8 = inlined_call_operand.vmem [shape: f32[32,64], index: 8, kind: input, shape index: {}]
  %s9 = inlined_call_operand.vmem [shape: f32[1,64], index: 9, kind: input, shape index: {}]
  %s10 = inlined_call_operand.vmem [shape: f32[64,4], index: 10, kind: input, shape index: {}]
  %s11 = inlined_call_operand.vmem [shape: f32[1,4], index: 11, kind: input, shape index: {}]
  %s12 = inlined_call_operand.vmem [shape: f32[2,64], index: 12, kind: input, shape index: {}]
  %s13 = inlined_call_operand.vmem [shape: f32[1,64], index: 13, kind: input, shape index: {}]
  %s14 = inlined_call_operand.vmem [shape: f32[8,64], index: 14, kind: input, shape index: {}]
  %s15 = inlined_call_operand.vmem [shape: f32[1,64], index: 15, kind: input, shape index: {}]
  %s16 = inlined_call_operand.vmem [shape: f32[64,32], index: 16, kind: input, shape index: {}]
  %s17 = inlined_call_operand.vmem [shape: f32[1,32], index: 17, kind: input, shape index: {}]
  %s18 = inlined_call_operand.vmem [shape: f32[32,4], index: 18, kind: input, shape index: {}]
  %s19 = inlined_call_operand.vmem [shape: f32[1,4], index: 19, kind: input, shape index: {}]
  %s20 = inlined_call_operand.vmem [shape: f32[2,128], index: 20, kind: output, shape index: {}]
  %s21 = sld [smem:[#allocation0]]
  $region90: #{vae_forward.1} parent=0
    _
  %s23 = ssub.s32 1, %s21
  %s24 = scalar_select 0, %s23, %s21
  // Predicated region
  $region2: #{vae_forward.1} parent=0 // pred_check
    _
  $region3: #{vae_forward.1} parent=0 // pred_check_branch
    %26 = sbr.rel (0) target = $region5
  $region4: #{vae_forward.1} parent=0 // pred_region
    _
  $region5: #{vae_forward.1} parent=0 // pred_fallthru
    _
  // Predicated region
  $region6: #{vae_forward.1} parent=0 // pred_check
    _
  $region7: #{vae_forward.1} parent=0 // pred_check_branch
    %28 = sbr.rel (0) target = $region9
  $region8: #{vae_forward.1} parent=0 // pred_region
    _
  $region9: #{vae_forward.1} parent=0 // pred_fallthru
    _
  // Predicated region
  $region10: #{vae_forward.1} parent=0 // pred_check
    _
  $region11: #{vae_forward.1} parent=0 // pred_check_branch
    %30 = sbr.rel (0) target = $region13
  $region12: #{vae_forward.1} parent=0 // pred_region
    _
  $region13: #{vae_forward.1} parent=0 // pred_fallthru
    _
  // Predicated region
  $region14: #{vae_forward.1} parent=0 // pred_check
    _
  $region15: #{vae_forward.1} parent=0 // pred_check_branch
    %32 = sbr.rel (0) target = $region17
  $region16: #{vae_forward.1} parent=0 // pred_region
    _
  $region17: #{vae_forward.1} parent=0 // pred_fallthru
    _
  // Predicated region
  $region18: #{vae_forward.1} parent=0 // pred_check
    _
  $region19: #{vae_forward.1} parent=0 // pred_check_branch
    %34 = sbr.rel (0) target = $region21
  $region20: #{vae_forward.1} parent=0 // pred_region
    _
  $region21: #{vae_forward.1} parent=0 // pred_fallthru
    _
  // Predicated region
  $region22: #{vae_forward.1} parent=0 // pred_check
    _
  $region23: #{vae_forward.1} parent=0 // pred_check_branch
    %36 = sbr.rel (0) target = $region25
  $region24: #{vae_forward.1} parent=0 // pred_region
    _
  $region25: #{vae_forward.1} parent=0 // pred_fallthru
    _
  // Predicated region
  $region26: #{vae_forward.1} parent=0 // pred_check
    _
  $region27: #{vae_forward.1} parent=0 // pred_check_branch
    %38 = sbr.rel (0) target = $region29
  $region28: #{vae_forward.1} parent=0 // pred_region
    _
  $region29: #{vae_forward.1} parent=0 // pred_fallthru
    _
  // Predicated region
  $region30: #{vae_forward.1} parent=0 // pred_check
    _
  $region31: #{vae_forward.1} parent=0 // pred_check_branch
    %40 = sbr.rel (0) target = $region33
  $region32: #{vae_forward.1} parent=0 // pred_region
    _
  $region33: #{vae_forward.1} parent=0 // pred_fallthru
    _
  // Predicated region
  $region34: #{vae_forward.1} parent=0 // pred_check
    _
  $region35: #{vae_forward.1} parent=0 // pred_check_branch
    %42 = sbr.rel (0) target = $region37
  $region36: #{vae_forward.1} parent=0 // pred_region
    _
  $region37: #{vae_forward.1} parent=0 // pred_fallthru
    _
  // Predicated region
  $region38: #{vae_forward.1} parent=0 // pred_check
    _
  $region39: #{vae_forward.1} parent=0 // pred_check_branch
    %44 = sbr.rel (0) target = $region41
  $region40: #{vae_forward.1} parent=0 // pred_region
    _
  $region41: #{vae_forward.1} parent=0 // pred_fallthru
    _
  // Predicated region
  $region42: #{vae_forward.1} parent=0 // pred_check
    _
  $region43: #{vae_forward.1} parent=0 // pred_check_branch
    %46 = sbr.rel (0) target = $region45
  $region44: #{vae_forward.1} parent=0 // pred_region
    _
  $region45: #{vae_forward.1} parent=0 // pred_fallthru
    _
  // Predicated region
  $region46: #{vae_forward.1} parent=0 // pred_check
    _
  $region47: #{vae_forward.1} parent=0 // pred_check_branch
    %48 = sbr.rel (0) target = $region49
  $region48: #{vae_forward.1} parent=0 // pred_region
    _
  $region49: #{vae_forward.1} parent=0 // pred_fallthru
    _
  // Predicated region
  $region50: #{vae_forward.1} parent=0 // pred_check
    _
  $region51: #{vae_forward.1} parent=0 // pred_check_branch
    %50 = sbr.rel (0) target = $region53
  $region52: #{vae_forward.1} parent=0 // pred_region
    _
  $region53: #{vae_forward.1} parent=0 // pred_fallthru
    _
  // Predicated region
  $region54: #{vae_forward.1} parent=0 // pred_check
    _
  $region55: #{vae_forward.1} parent=0 // pred_check_branch
    %52 = sbr.rel (0) target = $region57
  $region56: #{vae_forward.1} parent=0 // pred_region
    _
  $region57: #{vae_forward.1} parent=0 // pred_fallthru
    _
  // Predicated region
  $region58: #{vae_forward.1} parent=0 // pred_check
    _
  $region59: #{vae_forward.1} parent=0 // pred_check_branch
    %54 = sbr.rel (0) target = $region61
  $region60: #{vae_forward.1} parent=0 // pred_region
    _
  $region61: #{vae_forward.1} parent=0 // pred_fallthru
    _
  // Predicated region
  $region62: #{vae_forward.1} parent=0 // pred_check
    _
  $region63: #{vae_forward.1} parent=0 // pred_check_branch
    %56 = sbr.rel (0) target = $region65
  $region64: #{vae_forward.1} parent=0 // pred_region
    _
  $region65: #{vae_forward.1} parent=0 // pred_fallthru
    _
  // Predicated region
  $region66: #{vae_forward.1} parent=0 // pred_check
    _
  $region67: #{vae_forward.1} parent=0 // pred_check_branch
    %58 = sbr.rel (0) target = $region69
  $region68: #{vae_forward.1} parent=0 // pred_region
    _
  $region69: #{vae_forward.1} parent=0 // pred_fallthru
    _
  // Predicated region
  $region70: #{vae_forward.1} parent=0 // pred_check
    _
  $region71: #{vae_forward.1} parent=0 // pred_check_branch
    %60 = sbr.rel (0) target = $region73
  $region72: #{vae_forward.1} parent=0 // pred_region
    _
  $region73: #{vae_forward.1} parent=0 // pred_fallthru
    _
  // Predicated region
  $region74: #{vae_forward.1} parent=0 // pred_check
    _
  $region75: #{vae_forward.1} parent=0 // pred_check_branch
    %62 = sbr.rel (0) target = $region77
  $region76: #{vae_forward.1} parent=0 // pred_region
    _
  $region77: #{vae_forward.1} parent=0 // pred_fallthru
    _
  // Predicated region
  $region78: #{vae_forward.1} parent=0 // pred_check
    _
  $region79: #{vae_forward.1} parent=0 // pred_check_branch
    %64 = sbr.rel (0) target = $region81
  $region80: #{vae_forward.1} parent=0 // pred_region
    _
  $region81: #{vae_forward.1} parent=0 // pred_fallthru
    _
  %v65 = vld [vmem:[%s1] sm:$0x3]
  %v66 = vld [vmem:[%s2] sm:$0x3]
  %v67 = vld [vmem:[%s0] sm:$0x3]
  %v68 = vld [vmem:[%s4] sm:$0xf]
  %v69 = vld [vmem:[%s6] sm:$0xff]
  %vm70 = vcmask 64512
  %v72 = vsel %vm70, %v66, 0
  %74 = vmatprep.subr.mxu0 0.0
  %75 = vmatpush1.msra.mxu0 0.0
  %76 = vmatprep.subr.mxu0 0.0
  %77 = vmatpush1.msra.mxu0 0.0
  %78 = vmatprep.subr.mxu0 0.0
  %79 = vmatpush1.msra.mxu0 0.0
  %80 = vmatprep.subr.mxu0 0.0
  %81 = vmatpush1.msra.mxu0 0.0
  %82 = vmatprep.subr.mxu0 0.0
  %83 = vmatpush1.msra.mxu0 0.0
  %84 = vmatprep.subr.mxu0 0.0
  %85 = vmatpush1.msra.mxu0 0.0
  %86 = vmatprep.subr.mxu0 0.0
  %87 = vmatpush1.msra.mxu0 0.0
  %88 = vmatprep.subr.mxu0 0.0
  %89 = vmatpush1.msra.mxu0 0.0
  %90 = vmatprep.subr.mxu0 0.0
  %91 = vmatpush1.msra.mxu0 0.0
  %92 = vmatprep.subr.mxu0 0.0
  %93 = vmatpush1.msra.mxu0 0.0
  %94 = vmatprep.subr.mxu0 0.0
  %95 = vmatpush1.msra.mxu0 0.0
  %96 = vmatprep.subr.mxu0 0.0
  %97 = vmatpush1.msra.mxu0 0.0
  %98 = vmatprep.subr.mxu0 0.0
  %99 = vmatpush1.msra.mxu0 0.0
  %100 = vmatprep.subr.mxu0 0.0
  %101 = vmatpush1.msra.mxu0 0.0
  %102 = vmatprep.subr.mxu0 0.0
  %103 = vmatpush1.msra.mxu0 0.0
  %104 = vmatprep.subr.mxu0 0.0
  %105 = vmatpush1.msra.mxu0 %v69
  %106 = vmatprep.subr.mxu0 0.0
  %107 = vmatpush2.msra.mxu0 0.0
  %108 = vmatprep.subr.mxu0 0.0
  %109 = vmatpush2.msra.mxu0 0.0
  %110 = vmatprep.subr.mxu0 0.0
  %111 = vmatpush2.msra.mxu0 0.0
  %112 = vmatprep.subr.mxu0 0.0
  %113 = vmatpush2.msra.mxu0 0.0
  %114 = vmatprep.subr.mxu0 0.0
  %115 = vmatpush2.msra.mxu0 0.0
  %116 = vmatprep.subr.mxu0 0.0
  %117 = vmatpush2.msra.mxu0 0.0
  %118 = vmatprep.subr.mxu0 0.0
  %119 = vmatpush2.msra.mxu0 0.0
  %120 = vmatprep.subr.mxu0 0.0
  %121 = vmatpush2.msra.mxu0 0.0
  %122 = vmatprep.subr.mxu0 0.0
  %123 = vmatpush2.msra.mxu0 0.0
  %124 = vmatprep.subr.mxu0 0.0
  %125 = vmatpush2.msra.mxu0 0.0
  %126 = vmatprep.subr.mxu0 0.0
  %127 = vmatpush2.msra.mxu0 0.0
  %128 = vmatprep.subr.mxu0 0.0
  %129 = vmatpush2.msra.mxu0 0.0
  %130 = vmatprep.subr.mxu0 0.0
  %131 = vmatpush2.msra.mxu0 0.0
  %132 = vmatprep.subr.mxu0 0.0
  %133 = vmatpush2.msra.mxu0 0.0
  %134 = vmatprep.subr.mxu0 0.0
  %135 = vmatpush2.msra.mxu0 0.0
  %136 = vmatprep.subr.mxu0 0.0
  %137 = vmatpush2.msra.mxu0 0.0
  %138 = vmatprep.mubr.f32.mxu0 0.0
  %139 = vmatmul.mubr.f32.gmra.mxu0 %v72
  %v140 = vpop.f32.mrf.mxu0
  %v141 = vadd.f32 0.0, %v140
  %v142 = vpop.f32.mrf.mxu0
  %143 = vdwg.mxu0
  %vm144 = vcmask 31744
  %v146 = vsel %vm144, %v67, 0
  %vm148 = vcmask 1043456
  %v150 = vsel %vm148, %v68, 0
  %152 = vmatprep.subr.mxu0 0.0
  %153 = vmatpush1.msra.mxu0 0.0
  %154 = vmatprep.subr.mxu0 0.0
  %155 = vmatpush1.msra.mxu0 0.0
  %156 = vmatprep.subr.mxu0 0.0
  %157 = vmatpush1.msra.mxu0 0.0
  %158 = vmatprep.subr.mxu0 0.0
  %159 = vmatpush1.msra.mxu0 0.0
  %160 = vmatprep.subr.mxu0 0.0
  %161 = vmatpush1.msra.mxu0 0.0
  %162 = vmatprep.subr.mxu0 0.0
  %163 = vmatpush1.msra.mxu0 0.0
  %164 = vmatprep.subr.mxu0 0.0
  %165 = vmatpush1.msra.mxu0 0.0
  %166 = vmatprep.subr.mxu0 0.0
  %167 = vmatpush1.msra.mxu0 0.0
  %168 = vmatprep.subr.mxu0 0.0
  %169 = vmatpush1.msra.mxu0 0.0
  %170 = vmatprep.subr.mxu0 0.0
  %171 = vmatpush1.msra.mxu0 0.0
  %172 = vmatprep.subr.mxu0 0.0
  %173 = vmatpush1.msra.mxu0 0.0
  %174 = vmatprep.subr.mxu0 0.0
  %175 = vmatpush1.msra.mxu0 0.0
  %176 = vmatprep.subr.mxu0 0.0
  %177 = vmatpush1.msra.mxu0 0.0
  %178 = vmatprep.subr.mxu0 0.0
  %179 = vmatpush1.msra.mxu0 0.0
  %180 = vmatprep.subr.mxu0 0.0
  %181 = vmatpush1.msra.mxu0 0.0
  %182 = vmatprep.subr.mxu0 0.0
  %183 = vmatpush1.msra.mxu0 %v150
  %184 = vmatprep.subr.mxu0 0.0
  %185 = vmatpush2.msra.mxu0 0.0
  %186 = vmatprep.subr.mxu0 0.0
  %187 = vmatpush2.msra.mxu0 0.0
  %188 = vmatprep.subr.mxu0 0.0
  %189 = vmatpush2.msra.mxu0 0.0
  %190 = vmatprep.subr.mxu0 0.0
  %191 = vmatpush2.msra.mxu0 0.0
  %192 = vmatprep.subr.mxu0 0.0
  %193 = vmatpush2.msra.mxu0 0.0
  %194 = vmatprep.subr.mxu0 0.0
  %195 = vmatpush2.msra.mxu0 0.0
  %196 = vmatprep.subr.mxu0 0.0
  %197 = vmatpush2.msra.mxu0 0.0
  %198 = vmatprep.subr.mxu0 0.0
  %199 = vmatpush2.msra.mxu0 0.0
  %200 = vmatprep.subr.mxu0 0.0
  %201 = vmatpush2.msra.mxu0 0.0
  %202 = vmatprep.subr.mxu0 0.0
  %203 = vmatpush2.msra.mxu0 0.0
  %204 = vmatprep.subr.mxu0 0.0
  %205 = vmatpush2.msra.mxu0 0.0
  %206 = vmatprep.subr.mxu0 0.0
  %207 = vmatpush2.msra.mxu0 0.0
  %208 = vmatprep.subr.mxu0 0.0
  %209 = vmatpush2.msra.mxu0 0.0
  %210 = vmatprep.subr.mxu0 0.0
  %211 = vmatpush2.msra.mxu0 0.0
  %212 = vmatprep.subr.mxu0 0.0
  %213 = vmatpush2.msra.mxu0 0.0
  %214 = vmatprep.subr.mxu0 0.0
  %215 = vmatpush2.msra.mxu0 0.0
  %216 = vmatprep.mubr.f32.mxu0 0.0
  %217 = vmatmul.mubr.f32.gmra.mxu0 %v146
  %v218 = vpop.f32.mrf.mxu0
  %v219 = vadd.f32 %v141, %v218
  %v220 = vpop.f32.mrf.mxu0
  %221 = vdwg.mxu0
  %v222 = vld [vmem:[%s5] sm:$0x1]
  %224 = vset.pattern.permute.xlu0 0
  %225 = vperm.xlu0 %224, %v65
  %v226 = vpop.permute.xlu0 %225
  %v229 = vlaneseq
  %v230 = vshrl.u32 %v229, 7
  %v231 = vsub.s32 0, %v230
  %v232 = vrot.slane %v222, %v231
  %v234 = vmul.f32 %v226, %v232
  %v235 = vadd.f32 %v219, %v234
  %v236 = vld [vmem:[%s7] sm:$0x1]
  %v238 = vlaneseq
  %v239 = vshrl.u32 %v238, 7
  %v240 = vsub.s32 0, %v239
  %v241 = vrot.slane %v236, %v240
  %v243 = vadd.f32 %v235, %v241
  %vm244 = vcmp.ge.f32.partialorder %v243, 0.0
  %v245 = vmul.f32 %v243, 0.2
  %v246 = vsel %vm244, %v243, %v245
  %v247 = vld [vmem:[%s8] sm:$0xff]
  %v248 = vld [vmem:[%s8 + $0x8] sm:$0xff]
  %v249 = vld [vmem:[%s8 + $0x10] sm:$0xff]
  %v250 = vld [vmem:[%s8 + $0x18] sm:$0xff]
  %v251 = vld [vmem:[%s9] sm:$0x1]
  %v253 = vlaneseq
  %v254 = vshrl.u32 %v253, 7
  %v255 = vsub.s32 0, %v254
  %v256 = vrot.slane %v251, %v255
  %vm258 = vcmask 261120
  %v260 = vsel %vm258, %v246, 0
  %262 = vmatprep.subr.mxu0 0.0
  %263 = vmatpush1.msra.mxu0 0.0
  %264 = vmatprep.subr.mxu0 0.0
  %265 = vmatpush1.msra.mxu0 0.0
  %266 = vmatprep.subr.mxu0 0.0
  %267 = vmatpush1.msra.mxu0 0.0
  %268 = vmatprep.subr.mxu0 0.0
  %269 = vmatpush1.msra.mxu0 0.0
  %270 = vmatprep.subr.mxu0 0.0
  %271 = vmatpush1.msra.mxu0 0.0
  %272 = vmatprep.subr.mxu0 0.0
  %273 = vmatpush1.msra.mxu0 0.0
  %274 = vmatprep.subr.mxu0 0.0
  %275 = vmatpush1.msra.mxu0 0.0
  %276 = vmatprep.subr.mxu0 0.0
  %277 = vmatpush1.msra.mxu0 0.0
  %278 = vmatprep.subr.mxu0 0.0
  %279 = vmatpush1.msra.mxu0 0.0
  %280 = vmatprep.subr.mxu0 0.0
  %281 = vmatpush1.msra.mxu0 0.0
  %282 = vmatprep.subr.mxu0 0.0
  %283 = vmatpush1.msra.mxu0 0.0
  %284 = vmatprep.subr.mxu0 0.0
  %285 = vmatpush1.msra.mxu0 0.0
  %286 = vmatprep.subr.mxu0 0.0
  %287 = vmatpush1.msra.mxu0 %v250
  %288 = vmatprep.subr.mxu0 0.0
  %289 = vmatpush1.msra.mxu0 %v249
  %290 = vmatprep.subr.mxu0 0.0
  %291 = vmatpush1.msra.mxu0 %v248
  %292 = vmatprep.subr.mxu0 0.0
  %293 = vmatpush1.msra.mxu0 %v247
  %294 = vmatprep.subr.mxu0 0.0
  %295 = vmatpush2.msra.mxu0 0.0
  %296 = vmatprep.subr.mxu0 0.0
  %297 = vmatpush2.msra.mxu0 0.0
  %298 = vmatprep.subr.mxu0 0.0
  %299 = vmatpush2.msra.mxu0 0.0
  %300 = vmatprep.subr.mxu0 0.0
  %301 = vmatpush2.msra.mxu0 0.0
  %302 = vmatprep.subr.mxu0 0.0
  %303 = vmatpush2.msra.mxu0 0.0
  %304 = vmatprep.subr.mxu0 0.0
  %305 = vmatpush2.msra.mxu0 0.0
  %306 = vmatprep.subr.mxu0 0.0
  %307 = vmatpush2.msra.mxu0 0.0
  %308 = vmatprep.subr.mxu0 0.0
  %309 = vmatpush2.msra.mxu0 0.0
  %310 = vmatprep.subr.mxu0 0.0
  %311 = vmatpush2.msra.mxu0 0.0
  %312 = vmatprep.subr.mxu0 0.0
  %313 = vmatpush2.msra.mxu0 0.0
  %314 = vmatprep.subr.mxu0 0.0
  %315 = vmatpush2.msra.mxu0 0.0
  %316 = vmatprep.subr.mxu0 0.0
  %317 = vmatpush2.msra.mxu0 0.0
  %318 = vmatprep.subr.mxu0 0.0
  %319 = vmatpush2.msra.mxu0 0.0
  %320 = vmatprep.subr.mxu0 0.0
  %321 = vmatpush2.msra.mxu0 0.0
  %322 = vmatprep.subr.mxu0 0.0
  %323 = vmatpush2.msra.mxu0 0.0
  %324 = vmatprep.subr.mxu0 0.0
  %325 = vmatpush2.msra.mxu0 0.0
  %326 = vmatprep.mubr.f32.mxu0 0.0
  %327 = vmatmul.mubr.f32.gmra.mxu0 %v260
  %v328 = vpop.f32.mrf.mxu0
  %v329 = vadd.f32 %v256, %v328
  %v330 = vpop.f32.mrf.mxu0
  %331 = vdwg.mxu0
  %vm332 = vcmp.ge.f32.partialorder %v329, 0.0
  %v333 = vmul.f32 %v329, 0.2
  %v334 = vsel %vm332, %v329, %v333
  %v335 = vld [vmem:[%s10] sm:$0xff]
  %v336 = vld [vmem:[%s10 + $0x8] sm:$0xff]
  %v337 = vld [vmem:[%s10 + $0x10] sm:$0xff]
  %v338 = vld [vmem:[%s10 + $0x18] sm:$0xff]
  %v339 = vld [vmem:[%s10 + $0x20] sm:$0xff]
  %v340 = vld [vmem:[%s10 + $0x28] sm:$0xff]
  %v341 = vld [vmem:[%s10 + $0x30] sm:$0xff]
  %v342 = vld [vmem:[%s10 + $0x38] sm:$0xff]
  %v343 = vld [vmem:[%s11] sm:$0x1]
  %v345 = vlaneseq
  %v346 = vshrl.u32 %v345, 7
  %v347 = vsub.s32 0, %v346
  %v348 = vrot.slane %v343, %v347
  %vm350 = vcmask 523264
  %v352 = vsel %vm350, %v334, 0
  %354 = vmatprep.subr.mxu0 0.0
  %355 = vmatpush1.msra.mxu0 0.0
  %356 = vmatprep.subr.mxu0 0.0
  %357 = vmatpush1.msra.mxu0 0.0
  %358 = vmatprep.subr.mxu0 0.0
  %359 = vmatpush1.msra.mxu0 0.0
  %360 = vmatprep.subr.mxu0 0.0
  %361 = vmatpush1.msra.mxu0 0.0
  %362 = vmatprep.subr.mxu0 0.0
  %363 = vmatpush1.msra.mxu0 0.0
  %364 = vmatprep.subr.mxu0 0.0
  %365 = vmatpush1.msra.mxu0 0.0
  %366 = vmatprep.subr.mxu0 0.0
  %367 = vmatpush1.msra.mxu0 0.0
  %368 = vmatprep.subr.mxu0 0.0
  %369 = vmatpush1.msra.mxu0 0.0
  %370 = vmatprep.subr.mxu0 0.0
  %371 = vmatpush1.msra.mxu0 %v342
  %372 = vmatprep.subr.mxu0 0.0
  %373 = vmatpush1.msra.mxu0 %v341
  %374 = vmatprep.subr.mxu0 0.0
  %375 = vmatpush1.msra.mxu0 %v340
  %376 = vmatprep.subr.mxu0 0.0
  %377 = vmatpush1.msra.mxu0 %v339
  %378 = vmatprep.subr.mxu0 0.0
  %379 = vmatpush1.msra.mxu0 %v338
  %380 = vmatprep.subr.mxu0 0.0
  %381 = vmatpush1.msra.mxu0 %v337
  %382 = vmatprep.subr.mxu0 0.0
  %383 = vmatpush1.msra.mxu0 %v336
  %384 = vmatprep.subr.mxu0 0.0
  %385 = vmatpush1.msra.mxu0 %v335
  %386 = vmatprep.subr.mxu0 0.0
  %387 = vmatpush2.msra.mxu0 0.0
  %388 = vmatprep.subr.mxu0 0.0
  %389 = vmatpush2.msra.mxu0 0.0
  %390 = vmatprep.subr.mxu0 0.0
  %391 = vmatpush2.msra.mxu0 0.0
  %392 = vmatprep.subr.mxu0 0.0
  %393 = vmatpush2.msra.mxu0 0.0
  %394 = vmatprep.subr.mxu0 0.0
  %395 = vmatpush2.msra.mxu0 0.0
  %396 = vmatprep.subr.mxu0 0.0
  %397 = vmatpush2.msra.mxu0 0.0
  %398 = vmatprep.subr.mxu0 0.0
  %399 = vmatpush2.msra.mxu0 0.0
  %400 = vmatprep.subr.mxu0 0.0
  %401 = vmatpush2.msra.mxu0 0.0
  %402 = vmatprep.subr.mxu0 0.0
  %403 = vmatpush2.msra.mxu0 0.0
  %404 = vmatprep.subr.mxu0 0.0
  %405 = vmatpush2.msra.mxu0 0.0
  %406 = vmatprep.subr.mxu0 0.0
  %407 = vmatpush2.msra.mxu0 0.0
  %408 = vmatprep.subr.mxu0 0.0
  %409 = vmatpush2.msra.mxu0 0.0
  %410 = vmatprep.subr.mxu0 0.0
  %411 = vmatpush2.msra.mxu0 0.0
  %412 = vmatprep.subr.mxu0 0.0
  %413 = vmatpush2.msra.mxu0 0.0
  %414 = vmatprep.subr.mxu0 0.0
  %415 = vmatpush2.msra.mxu0 0.0
  %416 = vmatprep.subr.mxu0 0.0
  %417 = vmatpush2.msra.mxu0 0.0
  %418 = vmatprep.mubr.f32.mxu0 0.0
  %419 = vmatmul.mubr.f32.gmra.mxu0 %v352
  %v420 = vpop.f32.mrf.mxu0
  %v421 = vadd.f32 %v348, %v420
  %v422 = vpop.f32.mrf.mxu0
  %423 = vdwg.mxu0
  %v424 = vld [vmem:[%s3] sm:$0x3]
  %426 = vrot.lane.b32.xlu0 %v424, 2
  %v427 = vpop.permute.xlu0 %426
  %v429 = vmul.f32 %v421, %v427
  %431 = vrot.lane.b32.xlu0 %v429, 126
  %v432 = vpop.permute.xlu0 %431
  %v434 = vadd.f32 %v421, %v432
  %v435 = vld [vmem:[%s14] sm:$0xff]
  %v436 = vld [vmem:[%s13] sm:$0x1]
  %v438 = vlaneseq
  %v439 = vshrl.u32 %v438, 7
  %v440 = vsub.s32 0, %v439
  %v441 = vrot.slane %v436, %v440
  %v443 = vmul.f32 %v226, %v441
  %444 = vmatprep.subr.mxu0 0.0
  %445 = vmatpush1.msra.mxu0 0.0
  %446 = vmatprep.subr.mxu0 0.0
  %447 = vmatpush1.msra.mxu0 0.0
  %448 = vmatprep.subr.mxu0 0.0
  %449 = vmatpush1.msra.mxu0 0.0
  %450 = vmatprep.subr.mxu0 0.0
  %451 = vmatpush1.msra.mxu0 0.0
  %452 = vmatprep.subr.mxu0 0.0
  %453 = vmatpush1.msra.mxu0 0.0
  %454 = vmatprep.subr.mxu0 0.0
  %455 = vmatpush1.msra.mxu0 0.0
  %456 = vmatprep.subr.mxu0 0.0
  %457 = vmatpush1.msra.mxu0 0.0
  %458 = vmatprep.subr.mxu0 0.0
  %459 = vmatpush1.msra.mxu0 0.0
  %460 = vmatprep.subr.mxu0 0.0
  %461 = vmatpush1.msra.mxu0 0.0
  %462 = vmatprep.subr.mxu0 0.0
  %463 = vmatpush1.msra.mxu0 0.0
  %464 = vmatprep.subr.mxu0 0.0
  %465 = vmatpush1.msra.mxu0 0.0
  %466 = vmatprep.subr.mxu0 0.0
  %467 = vmatpush1.msra.mxu0 0.0
  %468 = vmatprep.subr.mxu0 0.0
  %469 = vmatpush1.msra.mxu0 0.0
  %470 = vmatprep.subr.mxu0 0.0
  %471 = vmatpush1.msra.mxu0 0.0
  %472 = vmatprep.subr.mxu0 0.0
  %473 = vmatpush1.msra.mxu0 0.0
  %474 = vmatprep.subr.mxu0 0.0
  %475 = vmatpush1.msra.mxu0 %v435
  %476 = vmatprep.subr.mxu0 0.0
  %477 = vmatpush2.msra.mxu0 0.0
  %478 = vmatprep.subr.mxu0 0.0
  %479 = vmatpush2.msra.mxu0 0.0
  %480 = vmatprep.subr.mxu0 0.0
  %481 = vmatpush2.msra.mxu0 0.0
  %482 = vmatprep.subr.mxu0 0.0
  %483 = vmatpush2.msra.mxu0 0.0
  %484 = vmatprep.subr.mxu0 0.0
  %485 = vmatpush2.msra.mxu0 0.0
  %486 = vmatprep.subr.mxu0 0.0
  %487 = vmatpush2.msra.mxu0 0.0
  %488 = vmatprep.subr.mxu0 0.0
  %489 = vmatpush2.msra.mxu0 0.0
  %490 = vmatprep.subr.mxu0 0.0
  %491 = vmatpush2.msra.mxu0 0.0
  %492 = vmatprep.subr.mxu0 0.0
  %493 = vmatpush2.msra.mxu0 0.0
  %494 = vmatprep.subr.mxu0 0.0
  %495 = vmatpush2.msra.mxu0 0.0
  %496 = vmatprep.subr.mxu0 0.0
  %497 = vmatpush2.msra.mxu0 0.0
  %498 = vmatprep.subr.mxu0 0.0
  %499 = vmatpush2.msra.mxu0 0.0
  %500 = vmatprep.subr.mxu0 0.0
  %501 = vmatpush2.msra.mxu0 0.0
  %502 = vmatprep.subr.mxu0 0.0
  %503 = vmatpush2.msra.mxu0 0.0
  %504 = vmatprep.subr.mxu0 0.0
  %505 = vmatpush2.msra.mxu0 0.0
  %506 = vmatprep.subr.mxu0 0.0
  %507 = vmatpush2.msra.mxu0 0.0
  %508 = vmatprep.mubr.f32.mxu0 0.0
  %509 = vmatmul.mubr.f32.gmra.mxu0 %v72
  %v510 = vpop.f32.mrf.mxu0
  %v511 = vadd.f32 %v443, %v510
  %v512 = vpop.f32.mrf.mxu0
  %513 = vdwg.mxu0
  %v514 = vld [vmem:[%s15] sm:$0x1]
  %v516 = vlaneseq
  %v517 = vshrl.u32 %v516, 7
  %v518 = vsub.s32 0, %v517
  %v519 = vrot.slane %v514, %v518
  %v521 = vadd.f32 %v511, %v519
  %v522 = vld [vmem:[%s12] sm:$0x1]
  %524 = vset.pattern.permute.xlu0 0
  %525 = vperm.xlu0 %524, %v434
  %v526 = vpop.permute.xlu0 %525
  %v528 = vlaneseq
  %v529 = vshrl.u32 %v528, 7
  %v530 = vsub.s32 0, %v529
  %v531 = vrot.slane %v522, %v530
  %v532 = vmul.f32 %v526, %v531
  %v533 = vadd.f32 %v521, %v532
  %v534 = vld [vmem:[%s12 + $0x1] sm:$0x1]
  %535 = vset.pattern.permute.xlu0 1
  %536 = vperm.xlu0 %535, %v434
  %v537 = vpop.permute.xlu0 %536
  %v539 = vlaneseq
  %v540 = vshrl.u32 %v539, 7
  %v541 = vsub.s32 0, %v540
  %v542 = vrot.slane %v534, %v541
  %v543 = vmul.f32 %v537, %v542
  %v544 = vadd.f32 %v533, %v543
  %vm545 = vcmp.ge.f32.partialorder %v544, 0.0
  %v546 = vmul.f32 %v544, 0.2
  %v547 = vsel %vm545, %v544, %v546
  %v548 = vld [vmem:[%s16] sm:$0xff]
  %v549 = vld [vmem:[%s16 + $0x8] sm:$0xff]
  %v550 = vld [vmem:[%s16 + $0x10] sm:$0xff]
  %v551 = vld [vmem:[%s16 + $0x18] sm:$0xff]
  %v552 = vld [vmem:[%s16 + $0x20] sm:$0xff]
  %v553 = vld [vmem:[%s16 + $0x28] sm:$0xff]
  %v554 = vld [vmem:[%s16 + $0x30] sm:$0xff]
  %v555 = vld [vmem:[%s16 + $0x38] sm:$0xff]
  %v556 = vld [vmem:[%s17] sm:$0x1]
  %v558 = vlaneseq
  %v559 = vshrl.u32 %v558, 7
  %v560 = vsub.s32 0, %v559
  %v561 = vrot.slane %v556, %v560
  %v564 = vsel %vm350, %v547, 0
  %566 = vmatprep.subr.mxu0 0.0
  %567 = vmatpush1.msra.mxu0 0.0
  %568 = vmatprep.subr.mxu0 0.0
  %569 = vmatpush1.msra.mxu0 0.0
  %570 = vmatprep.subr.mxu0 0.0
  %571 = vmatpush1.msra.mxu0 0.0
  %572 = vmatprep.subr.mxu0 0.0
  %573 = vmatpush1.msra.mxu0 0.0
  %574 = vmatprep.subr.mxu0 0.0
  %575 = vmatpush1.msra.mxu0 0.0
  %576 = vmatprep.subr.mxu0 0.0
  %577 = vmatpush1.msra.mxu0 0.0
  %578 = vmatprep.subr.mxu0 0.0
  %579 = vmatpush1.msra.mxu0 0.0
  %580 = vmatprep.subr.mxu0 0.0
  %581 = vmatpush1.msra.mxu0 0.0
  %582 = vmatprep.subr.mxu0 0.0
  %583 = vmatpush1.msra.mxu0 %v555
  %584 = vmatprep.subr.mxu0 0.0
  %585 = vmatpush1.msra.mxu0 %v554
  %586 = vmatprep.subr.mxu0 0.0
  %587 = vmatpush1.msra.mxu0 %v553
  %588 = vmatprep.subr.mxu0 0.0
  %589 = vmatpush1.msra.mxu0 %v552
  %590 = vmatprep.subr.mxu0 0.0
  %591 = vmatpush1.msra.mxu0 %v551
  %592 = vmatprep.subr.mxu0 0.0
  %593 = vmatpush1.msra.mxu0 %v550
  %594 = vmatprep.subr.mxu0 0.0
  %595 = vmatpush1.msra.mxu0 %v549
  %596 = vmatprep.subr.mxu0 0.0
  %597 = vmatpush1.msra.mxu0 %v548
  %598 = vmatprep.subr.mxu0 0.0
  %599 = vmatpush2.msra.mxu0 0.0
  %600 = vmatprep.subr.mxu0 0.0
  %601 = vmatpush2.msra.mxu0 0.0
  %602 = vmatprep.subr.mxu0 0.0
  %603 = vmatpush2.msra.mxu0 0.0
  %604 = vmatprep.subr.mxu0 0.0
  %605 = vmatpush2.msra.mxu0 0.0
  %606 = vmatprep.subr.mxu0 0.0
  %607 = vmatpush2.msra.mxu0 0.0
  %608 = vmatprep.subr.mxu0 0.0
  %609 = vmatpush2.msra.mxu0 0.0
  %610 = vmatprep.subr.mxu0 0.0
  %611 = vmatpush2.msra.mxu0 0.0
  %612 = vmatprep.subr.mxu0 0.0
  %613 = vmatpush2.msra.mxu0 0.0
  %614 = vmatprep.subr.mxu0 0.0
  %615 = vmatpush2.msra.mxu0 0.0
  %616 = vmatprep.subr.mxu0 0.0
  %617 = vmatpush2.msra.mxu0 0.0
  %618 = vmatprep.subr.mxu0 0.0
  %619 = vmatpush2.msra.mxu0 0.0
  %620 = vmatprep.subr.mxu0 0.0
  %621 = vmatpush2.msra.mxu0 0.0
  %622 = vmatprep.subr.mxu0 0.0
  %623 = vmatpush2.msra.mxu0 0.0
  %624 = vmatprep.subr.mxu0 0.0
  %625 = vmatpush2.msra.mxu0 0.0
  %626 = vmatprep.subr.mxu0 0.0
  %627 = vmatpush2.msra.mxu0 0.0
  %628 = vmatprep.subr.mxu0 0.0
  %629 = vmatpush2.msra.mxu0 0.0
  %630 = vmatprep.mubr.f32.mxu0 0.0
  %631 = vmatmul.mubr.f32.gmra.mxu0 %v564
  %v632 = vpop.f32.mrf.mxu0
  %v633 = vadd.f32 %v561, %v632
  %v634 = vpop.f32.mrf.mxu0
  %635 = vdwg.mxu0
  %vm636 = vcmp.ge.f32.partialorder %v633, 0.0
  %v637 = vmul.f32 %v633, 0.2
  %v638 = vsel %vm636, %v633, %v637
  %v639 = vld [vmem:[%s18] sm:$0xff]
  %v640 = vld [vmem:[%s18 + $0x8] sm:$0xff]
  %v641 = vld [vmem:[%s18 + $0x10] sm:$0xff]
  %v642 = vld [vmem:[%s18 + $0x18] sm:$0xff]
  %v643 = vld [vmem:[%s19] sm:$0x1]
  %v645 = vlaneseq
  %v646 = vshrl.u32 %v645, 7
  %v647 = vsub.s32 0, %v646
  %v648 = vrot.slane %v643, %v647
  %v651 = vsel %vm258, %v638, 0
  %653 = vmatprep.subr.mxu0 0.0
  %654 = vmatpush1.msra.mxu0 0.0
  %655 = vmatprep.subr.mxu0 0.0
  %656 = vmatpush1.msra.mxu0 0.0
  %657 = vmatprep.subr.mxu0 0.0
  %658 = vmatpush1.msra.mxu0 0.0
  %659 = vmatprep.subr.mxu0 0.0
  %660 = vmatpush1.msra.mxu0 0.0
  %661 = vmatprep.subr.mxu0 0.0
  %662 = vmatpush1.msra.mxu0 0.0
  %663 = vmatprep.subr.mxu0 0.0
  %664 = vmatpush1.msra.mxu0 0.0
  %665 = vmatprep.subr.mxu0 0.0
  %666 = vmatpush1.msra.mxu0 0.0
  %667 = vmatprep.subr.mxu0 0.0
  %668 = vmatpush1.msra.mxu0 0.0
  %669 = vmatprep.subr.mxu0 0.0
  %670 = vmatpush1.msra.mxu0 0.0
  %671 = vmatprep.subr.mxu0 0.0
  %672 = vmatpush1.msra.mxu0 0.0
  %673 = vmatprep.subr.mxu0 0.0
  %674 = vmatpush1.msra.mxu0 0.0
  %675 = vmatprep.subr.mxu0 0.0
  %676 = vmatpush1.msra.mxu0 0.0
  %677 = vmatprep.subr.mxu0 0.0
  %678 = vmatpush1.msra.mxu0 %v642
  %679 = vmatprep.subr.mxu0 0.0
  %680 = vmatpush1.msra.mxu0 %v641
  %681 = vmatprep.subr.mxu0 0.0
  %682 = vmatpush1.msra.mxu0 %v640
  %683 = vmatprep.subr.mxu0 0.0
  %684 = vmatpush1.msra.mxu0 %v639
  %685 = vmatprep.subr.mxu0 0.0
  %686 = vmatpush2.msra.mxu0 0.0
  %687 = vmatprep.subr.mxu0 0.0
  %688 = vmatpush2.msra.mxu0 0.0
  %689 = vmatprep.subr.mxu0 0.0
  %690 = vmatpush2.msra.mxu0 0.0
  %691 = vmatprep.subr.mxu0 0.0
  %692 = vmatpush2.msra.mxu0 0.0
  %693 = vmatprep.subr.mxu0 0.0
  %694 = vmatpush2.msra.mxu0 0.0
  %695 = vmatprep.subr.mxu0 0.0
  %696 = vmatpush2.msra.mxu0 0.0
  %697 = vmatprep.subr.mxu0 0.0
  %698 = vmatpush2.msra.mxu0 0.0
  %699 = vmatprep.subr.mxu0 0.0
  %700 = vmatpush2.msra.mxu0 0.0
  %701 = vmatprep.subr.mxu0 0.0
  %702 = vmatpush2.msra.mxu0 0.0
  %703 = vmatprep.subr.mxu0 0.0
  %704 = vmatpush2.msra.mxu0 0.0
  %705 = vmatprep.subr.mxu0 0.0
  %706 = vmatpush2.msra.mxu0 0.0
  %707 = vmatprep.subr.mxu0 0.0
  %708 = vmatpush2.msra.mxu0 0.0
  %709 = vmatprep.subr.mxu0 0.0
  %710 = vmatpush2.msra.mxu0 0.0
  %711 = vmatprep.subr.mxu0 0.0
  %712 = vmatpush2.msra.mxu0 0.0
  %713 = vmatprep.subr.mxu0 0.0
  %714 = vmatpush2.msra.mxu0 0.0
  %715 = vmatprep.subr.mxu0 0.0
  %716 = vmatpush2.msra.mxu0 0.0
  %717 = vmatprep.mubr.f32.mxu0 0.0
  %718 = vmatmul.mubr.f32.gmra.mxu0 %v651
  %v719 = vpop.f32.mrf.mxu0
  %v720 = vadd.f32 %v648, %v719
  %v721 = vpop.f32.mrf.mxu0
  %722 = vdwg.mxu0
  %v723 = vmul.f32 %v720, 0.5
  %v724 = vtanh.pop %v723
  %v725 = vadd.f32 %v724, 1.0
  %v726 = vmul.f32 %v725, 0.5
  %728 = vrot.lane.b32.xlu0 %v421, 4
  %v729 = vpop.permute.xlu0 %728
  %v731 = vsel %vm144, %v726, %v729
  %v732 = vsel %vm70, %v731, 0.0
  %733 = vst [vmem:[%s20] sm:$0x3] %v732
  // Predicated region
  $region82: #{vae_forward.1} parent=0 // pred_check
    _
  $region83: #{vae_forward.1} parent=0 // pred_check_branch
    %735 = sbr.rel (0) target = $region85
  $region84: #{vae_forward.1} parent=0 // pred_region
    _
  $region85: #{vae_forward.1} parent=0 // pred_fallthru
    _
  // Predicated region
  $region86: #{vae_forward.1} parent=0 // pred_check
    _
  $region87: #{vae_forward.1} parent=0 // pred_check_branch
    %737 = sbr.rel (0) target = $region89
  $region88: #{vae_forward.1} parent=0 // pred_region
    _
  $region89: #{vae_forward.1} parent=0 // pred_fallthru
    _

</llo_original>
